<compile_context>
chip_gen: v6e
topology: v6e:2x2x1
jax: 0.10.0
libtpu: 0.0.40
codegen_flags: <defaults>
</compile_context>

<pallas_src>
import functools
import math

import jax
import jax.numpy as jnp
from jax.experimental import pallas as pl
from jax.experimental.pallas import tpu as pltpu

_LANE = 128
_ROW_CAP = 512                      # max rows / block (multiple of 8/16/32 sublane packs)
_TARGET_BLOCK_BYTES = 16 << 20      # ~16 MiB input block -> ~32 MiB double-buffered
_VMEM_LIMIT_BYTES = 48 << 20        # 2x input block + output + scratch + headroom (< v7x 64 MiB)


def _pick_tiles(R, L, itemsize, target_block_bytes):
    """Choose (rows, length) block sizes for the flattened (R, L) max-reduce."""
    pack = max(8, 32 // itemsize)   # sublane packing: f32 -> 8, bf16 -> 16, int8 -> 32

    # Rows per block: full extent when small, otherwise a pack-aligned cap.
    r_blk = R if R <= _ROW_CAP else _ROW_CAP

    # Prefer >= ~4 row blocks (grid axis 0 is "parallel" -> TensorCore sharding on v7x)
    # as long as each block still moves enough bytes to amortize the per-grid-step cost.
    # Block bytes stay constant because l_blk below is derived from r_blk, so this is
    # essentially free on single-core parts (v5e/v6e).
    min_split_bytes = min(4 << 20, max(target_block_bytes // 4, 1))
    if R >= 4 * pack:
        quarter = -(-R // 4)                      # ceil(R / 4)
        quarter = -(-quarter // pack) * pack      # round up to sublane pack
        if quarter < r_blk and quarter * L * itemsize >= min_split_bytes:
            r_blk = quarter

    # Length (reduction) tile: fill the per-block byte budget; multiple of 128 lanes
    # whenever the length axis is actually split.
    l_cap = max(_LANE, (target_block_bytes // (r_blk * itemsize)) // _LANE * _LANE)
    l_blk = L if L <= l_cap else l_cap
    return r_blk, l_blk


def _global_max_pool_kernel(x_ref, o_ref, acc_ref, *, l_valid_full, l_valid_last,
                            neg_fill):
    """Running max over the L grid axis.

    x_ref  : (r_blk, l_blk) input block.
    o_ref  : (r_blk, 1) output block (written once, on the last L step).
    acc_ref: (r_blk, 128) VMEM scratch holding lane-wise running maxima per row.
    l_valid_full / l_valid_last: static number of valid columns in full / last L blocks.
    """
    li = pl.program_id(1)
    nl = pl.num_programs(1)

    @pl.when(li == 0)
    def _init():
        acc_ref[...] = jnp.full(acc_ref.shape, neg_fill, dtype=acc_ref.dtype)

    def fold(valid):
        # VPU fold of `valid` columns into the 128-lane accumulator.  All offsets static.
        n_full = valid // _LANE
        rem = valid - n_full * _LANE
        if n_full > 0:
            def body(k, carry):
                off = pl.multiple_of(k * _LANE, _LANE)
                acc_ref[...] = jnp.maximum(acc_ref[...], x_ref[:, pl.ds(off, _LANE)])
                return carry
            jax.lax.fori_loop(0, n_full, body, 0, unroll=(n_full <= 8))
        if rem > 0:
            # Only the statically-known partial slab pays any tail handling.
            tail = x_ref[:, pl.ds(n_full * _LANE, rem)]
            acc_ref[...] = jnp.maximum(
                acc_ref[...], jnp.max(tail, axis=-1, keepdims=True))

    if l_valid_last == l_valid_full:
        fold(l_valid_full)
    else:
        @pl.when(li < nl - 1)
        def _full_block():
            fold(l_valid_full)

        @pl.when(li == nl - 1)
        def _last_block():
            fold(l_valid_last)

    # Single cross-lane (XLU) reduce + store, once per row block.
    @pl.when(li == nl - 1)
    def _finalize():
        o_ref[...] = jnp.max(acc_ref[...], axis=-1, keepdims=True).astype(o_ref.dtype)


def global_max_pooling_1d(x, data_format=2, *,
                          target_block_bytes=_TARGET_BLOCK_BYTES,
                          min_pallas_elems=64 * 1024):
    """Equivalent of GlobalMaxPooling1D.forward: torch.max(x, axis=step_axis).values."""
    step_axis = 1 if data_format == 'channels_last' else 2
    # Canonicalize: always reduce over the last axis.
    if step_axis != x.ndim - 1:
        x = jnp.moveaxis(x, step_axis, -1)

    *lead, L = x.shape
    R = math.prod(lead) if lead else 1

    if jnp.issubdtype(x.dtype, jnp.floating):
        neg_fill = float('-inf')
    elif jnp.issubdtype(x.dtype, jnp.integer):
        neg_fill = int(jnp.iinfo(x.dtype).min)
    else:
        return jnp.max(x, axis=-1)          # bool & friends: let XLA handle it

    # Tiny inputs: launch/grid-step overhead dominates; XLA's native reduce is faster.
    if R * L < min_pallas_elems:
        return jnp.max(x, axis=-1)

    x2 = x.reshape(R, L)
    itemsize = x.dtype.itemsize
    r_blk, l_blk = _pick_tiles(R, L, itemsize, target_block_bytes)
    n_l = pl.cdiv(L, l_blk)
    l_valid_last = L - (n_l - 1) * l_blk    # static valid width of the last L block

    kernel = functools.partial(
        _global_max_pool_kernel,
        l_valid_full=l_blk, l_valid_last=l_valid_last, neg_fill=neg_fill)

    out = pl.pallas_call(
        kernel,
        out_shape=jax.ShapeDtypeStruct((R, 1), x.dtype),
        grid=(pl.cdiv(R, r_blk), n_l),
        in_specs=[pl.BlockSpec((r_blk, l_blk), lambda r, l: (r, l))],
        # Same output block for every l -> written once per row block (last L step).
        out_specs=pl.BlockSpec((r_blk, 1), lambda r, l: (r, 0)),
        scratch_shapes=[pltpu.VMEM((r_blk, _LANE), x.dtype)],
        compiler_params=pltpu.CompilerParams(
            dimension_semantics=("parallel", "arbitrary"),
            vmem_limit_bytes=_VMEM_LIMIT_BYTES),
        cost_estimate=pl.CostEstimate(
            flops=R * L, transcendentals=0,
            bytes_accessed=R * L * itemsize + R * itemsize),
    )(x2)

    return out.reshape(tuple(lead))


if __name__ == "__main__":
    key = jax.random.PRNGKey(0)
    k1, k2, k3, k4, k5, k6 = jax.random.split(key, 6)

    # 1) Small canonical module shape, channels-first (B, C, L): tiny-input fallback path.
    x1 = jax.random.normal(k1, (2, 4, 16), dtype=jnp.float32)
    o1 = jax.block_until_ready(global_max_pooling_1d(x1))
    assert o1.shape == (2, 4)
    assert jnp.allclose(o1, jnp.max(x1, axis=2))

    # 2) Pallas path, default tiling (single 8 MiB block, grid=(1,1)).
    x2 = jax.random.normal(k2, (4, 128, 4096), dtype=jnp.float32)
    o2 = jax.block_until_ready(global_max_pooling_1d(x2))
    assert o2.shape == (4, 128)
    assert jnp.allclose(o2, jnp.max(x2, axis=2))

    # 3) Ragged multi-block grid: small byte budget -> grid=(1,7), full-extent rows (R=15),
    #    last L block with 6 full slabs + an 88-wide partial tail slab.
    x3 = jax.random.normal(k3, (3, 5, 7000), dtype=jnp.float32)
    o3 = jax.block_until_ready(global_max_pooling_1d(
        x3, target_block_bytes=64 * 1024, min_pallas_elems=0))
    assert o3.shape == (3, 5)
    assert jnp.allclose(o3, jnp.max(x3, axis=2))

    # 4) Row-split (megacore) path + multiple L blocks: grid=(4,2), r_blk=32, l_blk=2048.
    x4 = jax.random.normal(k4, (8, 16, 4096), dtype=jnp.float32)
    o4 = jax.block_until_ready(global_max_pooling_1d(
        x4, target_block_bytes=256 * 1024, min_pallas_elems=0))
    assert o4.shape == (8, 16)
    assert jnp.allclose(o4, jnp.max(x4, axis=2))

    # 5) bf16: dtype-aware tiling / sublane packing; max is exact so compare bit-for-bit.
    x5 = jax.random.normal(k5, (4, 128, 4096), dtype=jnp.bfloat16)
    o5 = jax.block_until_ready(global_max_pooling_1d(x5))
    assert o5.shape == (4, 128)
    assert jnp.array_equal(o5, jnp.max(x5, axis=2))

    # 6) channels_last layout: reduce over axis=1 (torch.max(input, axis=1).values).
    x6 = jax.random.normal(k6, (2, 16, 4), dtype=jnp.float32)
    o6 = jax.block_until_ready(
        global_max_pooling_1d(x6, data_format='channels_last'))
    assert o6.shape == (2, 4)
    assert jnp.allclose(o6, jnp.max(x6, axis=1))

    print("KERNEL_OK")
</pallas_src>

<mosaic_0001>
module attributes {stable_mosaic.version = 11 : i64} {
  func.func @_global_max_pool_kernel(%arg0: i32, %arg1: i32, %arg2: memref<512x4096xf32, #tpu.memory_space<vmem>>, %arg3: memref<512x1xf32, #tpu.memory_space<vmem>>, %arg4: memref<512x128xf32, #tpu.memory_space<vmem>>) attributes {dimension_semantics = [#tpu.dimension_semantics<parallel>, #tpu.dimension_semantics<arbitrary>], iteration_bounds = array<i64: 1, 1>, scalar_prefetch = 0 : i64, scratch_operands = 1 : i64, tpu.core_type = #tpu.core_type<tc>, window_params = [{transform_indices = @transform_0, window_bounds = array<i64: 512, 4096>}, {transform_indices = @transform_1, window_bounds = array<i64: 512, 1>}]} {
    %c0_i32 = arith.constant 0 : i32
    %0 = arith.cmpi eq, %arg1, %c0_i32 : i32
    %1 = arith.extui %0 : i1 to i32
    %c0_i32_0 = arith.constant 0 : i32
    %2 = arith.cmpi ne, %1, %c0_i32_0 : i32
    scf.if %2 {
      %cst = arith.constant 0xFF800000 : f32
      %7 = vector.broadcast %cst : f32 to vector<512x128xf32>
      %c0 = arith.constant 0 : index
      %c0_5 = arith.constant 0 : index
      %8 = vector.load %arg4[%c0, %c0_5] : memref<512x128xf32, #tpu.memory_space<vmem>>, vector<512x128xf32>
      tpu.vector_store %arg4[%c0, %c0_5], %7 {strides = array<i32>} : memref<512x128xf32, #tpu.memory_space<vmem>>, vector<512x128xf32>,
    } else {
    }
    %c0_i32_1 = arith.constant 0 : i32
    %c32_i32 = arith.constant 32 : i32
    %3 = arith.addi %c0_i32_1, %c32_i32 : i32
    %c1_i32 = arith.constant 1 : i32
    scf.for %arg5 = %c0_i32_1 to %3 step %c1_i32  : i32 {
      %c128_i32 = arith.constant 128 : i32
      %7 = arith.muli %arg5, %c128_i32 : i32
      %8 = tpu.assume_multiple %7, 128 : i32
      %c0 = arith.constant 0 : index
      %c0_5 = arith.constant 0 : index
      %9 = vector.load %arg4[%c0, %c0_5] : memref<512x128xf32, #tpu.memory_space<vmem>>, vector<512x128xf32>
      %c0_6 = arith.constant 0 : index
      %10 = arith.index_cast %8 : i32 to index
      %11 = vector.load %arg2[%c0_6, %10] : memref<512x4096xf32, #tpu.memory_space<vmem>>, vector<512x128xf32>
      %12 = arith.maximumf %9, %11 : vector<512x128xf32>
      %c0_7 = arith.constant 0 : index
      %c0_8 = arith.constant 0 : index
      %13 = vector.load %arg4[%c0_7, %c0_8] : memref<512x128xf32, #tpu.memory_space<vmem>>, vector<512x128xf32>
      tpu.vector_store %arg4[%c0_7, %c0_8], %12 {strides = array<i32>} : memref<512x128xf32, #tpu.memory_space<vmem>>, vector<512x128xf32>,
    }
    %c32_i32_2 = arith.constant 32 : i32
    %c0_i32_3 = arith.constant 0 : i32
    %4 = arith.cmpi eq, %arg1, %c0_i32_3 : i32
    %5 = arith.extui %4 : i1 to i32
    %c0_i32_4 = arith.constant 0 : i32
    %6 = arith.cmpi ne, %5, %c0_i32_4 : i32
    scf.if %6 {
      %c0 = arith.constant 0 : index
      %c0_5 = arith.constant 0 : index
      %7 = vector.load %arg4[%c0, %c0_5] : memref<512x128xf32, #tpu.memory_space<vmem>>, vector<512x128xf32>
      %cst = arith.constant dense<0xFF800000> : vector<512xf32>
      %8 = vector.multi_reduction <maximumf>, %7, %cst [1] : vector<512x128xf32> to vector<512xf32>
      %9 = vector.shape_cast %8 : vector<512xf32> to vector<512x1xf32>
      %c0_6 = arith.constant 0 : index
      %c0_7 = arith.constant 0 : index
      %10 = vector.load %arg3[%c0_6, %c0_7] : memref<512x1xf32, #tpu.memory_space<vmem>>, vector<512x1xf32>
      tpu.vector_store %arg3[%c0_6, %c0_7], %9 {strides = array<i32>} : memref<512x1xf32, #tpu.memory_space<vmem>>, vector<512x1xf32>,
    } else {
    }
    return
  }
  func.func @transform_0(%arg0: i32, %arg1: i32) -> (i32, i32) {
    %c0_i32 = arith.constant 0 : i32
    return %arg0, %arg1 : i32, i32
  }
  func.func @transform_1(%arg0: i32, %arg1: i32) -> (i32, i32) {
    %c0_i32 = arith.constant 0 : i32
    %c0_i32_0 = arith.constant 0 : i32
    return %arg0, %c0_i32 : i32, i32
  }
}

</mosaic_0001>

<llo_original>
// kernel: tpu_custom_call.1
$region0: #{tpu_custom_call.1}
  #allocation0 [shape = 'u32[]', space=smem, size = 0x4, offset = 0x4, fixed_abs, tag = 'smem constant byte address 0x4 - core index']
  #allocation1 [shape = 'u32[144,128]{1,0:T(1,128)}', space=vmem, size = 0x12000, scoped, tag = 'internal scratch']
  #allocation2 [shape = 'f32[512,128]{1,0:T(8,128)}', space=vmem, size = 0x40000, scoped, tag = 'scratch operand']
  %s0 = inlined_call_operand.hbm [shape: f32[512,4096], index: 0, kind: input, shape index: {}]
  %s1 = inlined_call_operand.vmem [shape: f32[512,1], index: 1, kind: output, shape index: {}]
  %s2 = sld [smem:[#allocation0]]
  $region33: #{tpu_custom_call.1} parent=0
    _
  %s4 = ssub.s32 1, %s2
  %s5 = scalar_select 0, %s4, %s2
  $region1: #{tpu_custom_call.1} parent=0
    #allocation3 [shape = 'u8[8388608]{0}', space=vmem, size = 0x800000, scoped, tag = 'input window, operand 0, single buffered']
    #allocation4 [shape = 's32[1]{0}', space=sflag, size = 0x4, scoped, tag = 'scoped memory for tpu_custom_call.1']
    %6 = vsyncpa [#allocation4], 0
    // Predicated region
    $region2: #{tpu_custom_call.1} parent=1 // pred_check
      _
    $region3: #{tpu_custom_call.1} parent=1 // pred_check_branch
      %8 = sbr.rel (0) target = $region5
    $region4: #{tpu_custom_call.1} parent=1 // pred_region
      %s10 = ssub.s32 262144, 262144
      %11 = vsyncadd [#allocation4], %s10
      %s12 = sshll.u32 [#allocation3], 4
      %s13 = int_to_ptr.vmem [resolvable:$true] %s12
      %18 = dma.hbm_to_vmem [thread:$0]  %s0, 262144, %s13, [#allocation4], 4096, 4096, 256
    $region5: #{tpu_custom_call.1} parent=1 // pred_fallthru
      _
    // Predicated region
    $region6: #{tpu_custom_call.1} parent=1 // pred_check
      _
    $region7: #{tpu_custom_call.1} parent=1 // pred_check_branch
      %20 = sbr.rel (0) target = $region9
    $region8: #{tpu_custom_call.1} parent=1 // pred_region
      %21 = dma.done [#allocation4], 262144
    $region9: #{tpu_custom_call.1} parent=1 // pred_fallthru
      _
    %p22 = scmp.eq.s32.totalorder 0, 0
    // Predicated region
    $region10: #{tpu_custom_call.1} parent=1 // pred_check
      %p23 = pneg %p22
    $region11: #{tpu_custom_call.1} parent=1 // pred_check_branch
      %25 = sbr.rel (%p23) target = $region13
    $region12: #{tpu_custom_call.1} parent=1 // pred_region
      %26 = vst [vmem:[#allocation2] sm:$0xff] -inf
      %27 = vst [vmem:[#allocation2 + $0x8] sm:$0xff] -inf
      %28 = vst [vmem:[#allocation2 + $0x10] sm:$0xff] -inf
      %29 = vst [vmem:[#allocation2 + $0x18] sm:$0xff] -inf
      %30 = vst [vmem:[#allocation2 + $0x20] sm:$0xff] -inf
      %31 = vst [vmem:[#allocation2 + $0x28] sm:$0xff] -inf
      %32 = vst [vmem:[#allocation2 + $0x30] sm:$0xff] -inf
      %33 = vst [vmem:[#allocation2 + $0x38] sm:$0xff] -inf
      %34 = vst [vmem:[#allocation2 + $0x40] sm:$0xff] -inf
      %35 = vst [vmem:[#allocation2 + $0x48] sm:$0xff] -inf
      %36 = vst [vmem:[#allocation2 + $0x50] sm:$0xff] -inf
      %37 = vst [vmem:[#allocation2 + $0x58] sm:$0xff] -inf
      %38 = vst [vmem:[#allocation2 + $0x60] sm:$0xff] -inf
      %39 = vst [vmem:[#allocation2 + $0x68] sm:$0xff] -inf
      %40 = vst [vmem:[#allocation2 + $0x70] sm:$0xff] -inf
      %41 = vst [vmem:[#allocation2 + $0x78] sm:$0xff] -inf
      %42 = vst [vmem:[#allocation2 + $0x80] sm:$0xff] -inf
      %43 = vst [vmem:[#allocation2 + $0x88] sm:$0xff] -inf
      %44 = vst [vmem:[#allocation2 + $0x90] sm:$0xff] -inf
      %45 = vst [vmem:[#allocation2 + $0x98] sm:$0xff] -inf
      %46 = vst [vmem:[#allocation2 + $0xa0] sm:$0xff] -inf
      %47 = vst [vmem:[#allocation2 + $0xa8] sm:$0xff] -inf
      %48 = vst [vmem:[#allocation2 + $0xb0] sm:$0xff] -inf
      %49 = vst [vmem:[#allocation2 + $0xb8] sm:$0xff] -inf
      %50 = vst [vmem:[#allocation2 + $0xc0] sm:$0xff] -inf
      %51 = vst [vmem:[#allocation2 + $0xc8] sm:$0xff] -inf
      %52 = vst [vmem:[#allocation2 + $0xd0] sm:$0xff] -inf
      %53 = vst [vmem:[#allocation2 + $0xd8] sm:$0xff] -inf
      %54 = vst [vmem:[#allocation2 + $0xe0] sm:$0xff] -inf
      %55 = vst [vmem:[#allocation2 + $0xe8] sm:$0xff] -inf
      %56 = vst [vmem:[#allocation2 + $0xf0] sm:$0xff] -inf
      %57 = vst [vmem:[#allocation2 + $0xf8] sm:$0xff] -inf
      %58 = vst [vmem:[#allocation2 + $0x100] sm:$0xff] -inf
      %59 = vst [vmem:[#allocation2 + $0x108] sm:$0xff] -inf
      %60 = vst [vmem:[#allocation2 + $0x110] sm:$0xff] -inf
      %61 = vst [vmem:[#allocation2 + $0x118] sm:$0xff] -inf
      %62 = vst [vmem:[#allocation2 + $0x120] sm:$0xff] -inf
      %63 = vst [vmem:[#allocation2 + $0x128] sm:$0xff] -inf
      %64 = vst [vmem:[#allocation2 + $0x130] sm:$0xff] -inf
      %65 = vst [vmem:[#allocation2 + $0x138] sm:$0xff] -inf
      %66 = vst [vmem:[#allocation2 + $0x140] sm:$0xff] -inf
      %67 = vst [vmem:[#allocation2 + $0x148] sm:$0xff] -inf
      %68 = vst [vmem:[#allocation2 + $0x150] sm:$0xff] -inf
      %69 = vst [vmem:[#allocation2 + $0x158] sm:$0xff] -inf
      %70 = vst [vmem:[#allocation2 + $0x160] sm:$0xff] -inf
      %71 = vst [vmem:[#allocation2 + $0x168] sm:$0xff] -inf
      %72 = vst [vmem:[#allocation2 + $0x170] sm:$0xff] -inf
      %73 = vst [vmem:[#allocation2 + $0x178] sm:$0xff] -inf
      %74 = vst [vmem:[#allocation2 + $0x180] sm:$0xff] -inf
      %75 = vst [vmem:[#allocation2 + $0x188] sm:$0xff] -inf
      %76 = vst [vmem:[#allocation2 + $0x190] sm:$0xff] -inf
      %77 = vst [vmem:[#allocation2 + $0x198] sm:$0xff] -inf
      %78 = vst [vmem:[#allocation2 + $0x1a0] sm:$0xff] -inf
      %79 = vst [vmem:[#allocation2 + $0x1a8] sm:$0xff] -inf
      %80 = vst [vmem:[#allocation2 + $0x1b0] sm:$0xff] -inf
      %81 = vst [vmem:[#allocation2 + $0x1b8] sm:$0xff] -inf
      %82 = vst [vmem:[#allocation2 + $0x1c0] sm:$0xff] -inf
      %83 = vst [vmem:[#allocation2 + $0x1c8] sm:$0xff] -inf
      %84 = vst [vmem:[#allocation2 + $0x1d0] sm:$0xff] -inf
      %85 = vst [vmem:[#allocation2 + $0x1d8] sm:$0xff] -inf
      %86 = vst [vmem:[#allocation2 + $0x1e0] sm:$0xff] -inf
      %87 = vst [vmem:[#allocation2 + $0x1e8] sm:$0xff] -inf
      %88 = vst [vmem:[#allocation2 + $0x1f0] sm:$0xff] -inf
      %89 = vst [vmem:[#allocation2 + $0x1f8] sm:$0xff] -inf
    $region13: #{tpu_custom_call.1} parent=1 // pred_fallthru
      _
    loop: start=0, step=1, limit=32
    $region14: #{tpu_custom_call.1} parent=1 // loop_pre_header
      _
    $region15: #{tpu_custom_call.1} parent=1 // loop_header
      %s91 = sphi 0, %s95
      %p92 = scmp.ge.s32.totalorder %s91, 32
    $region16: #{tpu_custom_call.1} parent=1 // loop_header_branch
      %94 = sbr.rel (%p92) target = $region20
    $region17: #{tpu_custom_call.1} parent=1 // loop_body
      %s96 = smul.u32 %s91, 128
      %v97 = vld [vmem:[#allocation2] sm:$0xff]
      %v98 = vld [vmem:[#allocation2 + $0x8] sm:$0xff]
      %v99 = vld [vmem:[#allocation2 + $0x10] sm:$0xff]
      %v100 = vld [vmem:[#allocation2 + $0x18] sm:$0xff]
      %v101 = vld [vmem:[#allocation2 + $0x20] sm:$0xff]
      %v102 = vld [vmem:[#allocation2 + $0x28] sm:$0xff]
      %v103 = vld [vmem:[#allocation2 + $0x30] sm:$0xff]
      %v104 = vld [vmem:[#allocation2 + $0x38] sm:$0xff]
      %v105 = vld [vmem:[#allocation2 + $0x40] sm:$0xff]
      %v106 = vld [vmem:[#allocation2 + $0x48] sm:$0xff]
      %v107 = vld [vmem:[#allocation2 + $0x50] sm:$0xff]
      %v108 = vld [vmem:[#allocation2 + $0x58] sm:$0xff]
      %v109 = vld [vmem:[#allocation2 + $0x60] sm:$0xff]
      %v110 = vld [vmem:[#allocation2 + $0x68] sm:$0xff]
      %v111 = vld [vmem:[#allocation2 + $0x70] sm:$0xff]
      %v112 = vld [vmem:[#allocation2 + $0x78] sm:$0xff]
      %v113 = vld [vmem:[#allocation2 + $0x80] sm:$0xff]
      %v114 = vld [vmem:[#allocation2 + $0x88] sm:$0xff]
      %v115 = vld [vmem:[#allocation2 + $0x90] sm:$0xff]
      %v116 = vld [vmem:[#allocation2 + $0x98] sm:$0xff]
      %v117 = vld [vmem:[#allocation2 + $0xa0] sm:$0xff]
      %v118 = vld [vmem:[#allocation2 + $0xa8] sm:$0xff]
      %v119 = vld [vmem:[#allocation2 + $0xb0] sm:$0xff]
      %v120 = vld [vmem:[#allocation2 + $0xb8] sm:$0xff]
      %v121 = vld [vmem:[#allocation2 + $0xc0] sm:$0xff]
      %v122 = vld [vmem:[#allocation2 + $0xc8] sm:$0xff]
      %v123 = vld [vmem:[#allocation2 + $0xd0] sm:$0xff]
      %v124 = vld [vmem:[#allocation2 + $0xd8] sm:$0xff]
      %v125 = vld [vmem:[#allocation2 + $0xe0] sm:$0xff]
      %v126 = vld [vmem:[#allocation2 + $0xe8] sm:$0xff]
      %v127 = vld [vmem:[#allocation2 + $0xf0] sm:$0xff]
      %v128 = vld [vmem:[#allocation2 + $0xf8] sm:$0xff]
      %v129 = vld [vmem:[#allocation2 + $0x100] sm:$0xff]
      %v130 = vld [vmem:[#allocation2 + $0x108] sm:$0xff]
      %v131 = vld [vmem:[#allocation2 + $0x110] sm:$0xff]
      %v132 = vld [vmem:[#allocation2 + $0x118] sm:$0xff]
      %v133 = vld [vmem:[#allocation2 + $0x120] sm:$0xff]
      %v134 = vld [vmem:[#allocation2 + $0x128] sm:$0xff]
      %v135 = vld [vmem:[#allocation2 + $0x130] sm:$0xff]
      %v136 = vld [vmem:[#allocation2 + $0x138] sm:$0xff]
      %v137 = vld [vmem:[#allocation2 + $0x140] sm:$0xff]
      %v138 = vld [vmem:[#allocation2 + $0x148] sm:$0xff]
      %v139 = vld [vmem:[#allocation2 + $0x150] sm:$0xff]
      %v140 = vld [vmem:[#allocation2 + $0x158] sm:$0xff]
      %v141 = vld [vmem:[#allocation2 + $0x160] sm:$0xff]
      %v142 = vld [vmem:[#allocation2 + $0x168] sm:$0xff]
      %v143 = vld [vmem:[#allocation2 + $0x170] sm:$0xff]
      %v144 = vld [vmem:[#allocation2 + $0x178] sm:$0xff]
      %v145 = vld [vmem:[#allocation2 + $0x180] sm:$0xff]
      %v146 = vld [vmem:[#allocation2 + $0x188] sm:$0xff]
      %v147 = vld [vmem:[#allocation2 + $0x190] sm:$0xff]
      %v148 = vld [vmem:[#allocation2 + $0x198] sm:$0xff]
      %v149 = vld [vmem:[#allocation2 + $0x1a0] sm:$0xff]
      %v150 = vld [vmem:[#allocation2 + $0x1a8] sm:$0xff]
      %v151 = vld [vmem:[#allocation2 + $0x1b0] sm:$0xff]
      %v152 = vld [vmem:[#allocation2 + $0x1b8] sm:$0xff]
      %v153 = vld [vmem:[#allocation2 + $0x1c0] sm:$0xff]
      %v154 = vld [vmem:[#allocation2 + $0x1c8] sm:$0xff]
      %v155 = vld [vmem:[#allocation2 + $0x1d0] sm:$0xff]
      %v156 = vld [vmem:[#allocation2 + $0x1d8] sm:$0xff]
      %v157 = vld [vmem:[#allocation2 + $0x1e0] sm:$0xff]
      %v158 = vld [vmem:[#allocation2 + $0x1e8] sm:$0xff]
      %v159 = vld [vmem:[#allocation2 + $0x1f0] sm:$0xff]
      %v160 = vld [vmem:[#allocation2 + $0x1f8] sm:$0xff]
      %s161 = sshra.s32 %s96, 7
      %s162 = sand.u32 %s96, 127
      %s163 = smul.addr %s161, 8
      %s164 = scalar_lea.vmem [#allocation3], %s163
      %v165 = vld [vmem:[%s164] sm:$0xff]
      %v166 = vld [vmem:[%s164 + $0x100] sm:$0xff]
      %v167 = vld [vmem:[%s164 + $0x200] sm:$0xff]
      %v168 = vld [vmem:[%s164 + $0x300] sm:$0xff]
      %v169 = vld [vmem:[%s164 + $0x400] sm:$0xff]
      %v170 = vld [vmem:[%s164 + $0x500] sm:$0xff]
      %v171 = vld [vmem:[%s164 + $0x600] sm:$0xff]
      %v172 = vld [vmem:[%s164 + $0x700] sm:$0xff]
      %v173 = vld [vmem:[%s164 + $0x800] sm:$0xff]
      %v174 = vld [vmem:[%s164 + $0x900] sm:$0xff]
      %v175 = vld [vmem:[%s164 + $0xa00] sm:$0xff]
      %v176 = vld [vmem:[%s164 + $0xb00] sm:$0xff]
      %v177 = vld [vmem:[%s164 + $0xc00] sm:$0xff]
      %v178 = vld [vmem:[%s164 + $0xd00] sm:$0xff]
      %v179 = vld [vmem:[%s164 + $0xe00] sm:$0xff]
      %v180 = vld [vmem:[%s164 + $0xf00] sm:$0xff]
      %v181 = vld [vmem:[%s164 + $0x1000] sm:$0xff]
      %v182 = vld [vmem:[%s164 + $0x1100] sm:$0xff]
      %v183 = vld [vmem:[%s164 + $0x1200] sm:$0xff]
      %v184 = vld [vmem:[%s164 + $0x1300] sm:$0xff]
      %v185 = vld [vmem:[%s164 + $0x1400] sm:$0xff]
      %v186 = vld [vmem:[%s164 + $0x1500] sm:$0xff]
      %v187 = vld [vmem:[%s164 + $0x1600] sm:$0xff]
      %v188 = vld [vmem:[%s164 + $0x1700] sm:$0xff]
      %v189 = vld [vmem:[%s164 + $0x1800] sm:$0xff]
      %v190 = vld [vmem:[%s164 + $0x1900] sm:$0xff]
      %v191 = vld [vmem:[%s164 + $0x1a00] sm:$0xff]
      %v192 = vld [vmem:[%s164 + $0x1b00] sm:$0xff]
      %v193 = vld [vmem:[%s164 + $0x1c00] sm:$0xff]
      %v194 = vld [vmem:[%s164 + $0x1d00] sm:$0xff]
      %v195 = vld [vmem:[%s164 + $0x1e00] sm:$0xff]
      %v196 = vld [vmem:[%s164 + $0x1f00] sm:$0xff]
      %v197 = vld [vmem:[%s164 + $0x2000] sm:$0xff]
      %v198 = vld [vmem:[%s164 + $0x2100] sm:$0xff]
      %v199 = vld [vmem:[%s164 + $0x2200] sm:$0xff]
      %v200 = vld [vmem:[%s164 + $0x2300] sm:$0xff]
      %v201 = vld [vmem:[%s164 + $0x2400] sm:$0xff]
      %v202 = vld [vmem:[%s164 + $0x2500] sm:$0xff]
      %v203 = vld [vmem:[%s164 + $0x2600] sm:$0xff]
      %v204 = vld [vmem:[%s164 + $0x2700] sm:$0xff]
      %v205 = vld [vmem:[%s164 + $0x2800] sm:$0xff]
      %v206 = vld [vmem:[%s164 + $0x2900] sm:$0xff]
      %v207 = vld [vmem:[%s164 + $0x2a00] sm:$0xff]
      %v208 = vld [vmem:[%s164 + $0x2b00] sm:$0xff]
      %v209 = vld [vmem:[%s164 + $0x2c00] sm:$0xff]
      %v210 = vld [vmem:[%s164 + $0x2d00] sm:$0xff]
      %v211 = vld [vmem:[%s164 + $0x2e00] sm:$0xff]
      %v212 = vld [vmem:[%s164 + $0x2f00] sm:$0xff]
      %v213 = vld [vmem:[%s164 + $0x3000] sm:$0xff]
      %v214 = vld [vmem:[%s164 + $0x3100] sm:$0xff]
      %v215 = vld [vmem:[%s164 + $0x3200] sm:$0xff]
      %v216 = vld [vmem:[%s164 + $0x3300] sm:$0xff]
      %v217 = vld [vmem:[%s164 + $0x3400] sm:$0xff]
      %v218 = vld [vmem:[%s164 + $0x3500] sm:$0xff]
      %v219 = vld [vmem:[%s164 + $0x3600] sm:$0xff]
      %v220 = vld [vmem:[%s164 + $0x3700] sm:$0xff]
      %v221 = vld [vmem:[%s164 + $0x3800] sm:$0xff]
      %v222 = vld [vmem:[%s164 + $0x3900] sm:$0xff]
      %v223 = vld [vmem:[%s164 + $0x3a00] sm:$0xff]
      %v224 = vld [vmem:[%s164 + $0x3b00] sm:$0xff]
      %v225 = vld [vmem:[%s164 + $0x3c00] sm:$0xff]
      %v226 = vld [vmem:[%s164 + $0x3d00] sm:$0xff]
      %v227 = vld [vmem:[%s164 + $0x3e00] sm:$0xff]
      %v228 = vld [vmem:[%s164 + $0x3f00] sm:$0xff]
      %v229 = vmax.f32 %v97, %v165
      %v230 = vmax.f32 %v98, %v166
      %v231 = vmax.f32 %v99, %v167
      %v232 = vmax.f32 %v100, %v168
      %v233 = vmax.f32 %v101, %v169
      %v234 = vmax.f32 %v102, %v170
      %v235 = vmax.f32 %v103, %v171
      %v236 = vmax.f32 %v104, %v172
      %v237 = vmax.f32 %v105, %v173
      %v238 = vmax.f32 %v106, %v174
      %v239 = vmax.f32 %v107, %v175
      %v240 = vmax.f32 %v108, %v176
      %v241 = vmax.f32 %v109, %v177
      %v242 = vmax.f32 %v110, %v178
      %v243 = vmax.f32 %v111, %v179
      %v244 = vmax.f32 %v112, %v180
      %v245 = vmax.f32 %v113, %v181
      %v246 = vmax.f32 %v114, %v182
      %v247 = vmax.f32 %v115, %v183
      %v248 = vmax.f32 %v116, %v184
      %v249 = vmax.f32 %v117, %v185
      %v250 = vmax.f32 %v118, %v186
      %v251 = vmax.f32 %v119, %v187
      %v252 = vmax.f32 %v120, %v188
      %v253 = vmax.f32 %v121, %v189
      %v254 = vmax.f32 %v122, %v190
      %v255 = vmax.f32 %v123, %v191
      %v256 = vmax.f32 %v124, %v192
      %v257 = vmax.f32 %v125, %v193
      %v258 = vmax.f32 %v126, %v194
      %v259 = vmax.f32 %v127, %v195
      %v260 = vmax.f32 %v128, %v196
      %v261 = vmax.f32 %v129, %v197
      %v262 = vmax.f32 %v130, %v198
      %v263 = vmax.f32 %v131, %v199
      %v264 = vmax.f32 %v132, %v200
      %v265 = vmax.f32 %v133, %v201
      %v266 = vmax.f32 %v134, %v202
      %v267 = vmax.f32 %v135, %v203
      %v268 = vmax.f32 %v136, %v204
      %v269 = vmax.f32 %v137, %v205
      %v270 = vmax.f32 %v138, %v206
      %v271 = vmax.f32 %v139, %v207
      %v272 = vmax.f32 %v140, %v208
      %v273 = vmax.f32 %v141, %v209
      %v274 = vmax.f32 %v142, %v210
      %v275 = vmax.f32 %v143, %v211
      %v276 = vmax.f32 %v144, %v212
      %v277 = vmax.f32 %v145, %v213
      %v278 = vmax.f32 %v146, %v214
      %v279 = vmax.f32 %v147, %v215
      %v280 = vmax.f32 %v148, %v216
      %v281 = vmax.f32 %v149, %v217
      %v282 = vmax.f32 %v150, %v218
      %v283 = vmax.f32 %v151, %v219
      %v284 = vmax.f32 %v152, %v220
      %v285 = vmax.f32 %v153, %v221
      %v286 = vmax.f32 %v154, %v222
      %v287 = vmax.f32 %v155, %v223
      %v288 = vmax.f32 %v156, %v224
      %v289 = vmax.f32 %v157, %v225
      %v290 = vmax.f32 %v158, %v226
      %v291 = vmax.f32 %v159, %v227
      %v292 = vmax.f32 %v160, %v228
      %293 = vst [vmem:[#allocation2] sm:$0xff] %v229
      %294 = vst [vmem:[#allocation2 + $0x8] sm:$0xff] %v230
      %295 = vst [vmem:[#allocation2 + $0x10] sm:$0xff] %v231
      %296 = vst [vmem:[#allocation2 + $0x18] sm:$0xff] %v232
      %297 = vst [vmem:[#allocation2 + $0x20] sm:$0xff] %v233
      %298 = vst [vmem:[#allocation2 + $0x28] sm:$0xff] %v234
      %299 = vst [vmem:[#allocation2 + $0x30] sm:$0xff] %v235
      %300 = vst [vmem:[#allocation2 + $0x38] sm:$0xff] %v236
      %301 = vst [vmem:[#allocation2 + $0x40] sm:$0xff] %v237
      %302 = vst [vmem:[#allocation2 + $0x48] sm:$0xff] %v238
      %303 = vst [vmem:[#allocation2 + $0x50] sm:$0xff] %v239
      %304 = vst [vmem:[#allocation2 + $0x58] sm:$0xff] %v240
      %305 = vst [vmem:[#allocation2 + $0x60] sm:$0xff] %v241
      %306 = vst [vmem:[#allocation2 + $0x68] sm:$0xff] %v242
      %307 = vst [vmem:[#allocation2 + $0x70] sm:$0xff] %v243
      %308 = vst [vmem:[#allocation2 + $0x78] sm:$0xff] %v244
      %309 = vst [vmem:[#allocation2 + $0x80] sm:$0xff] %v245
      %310 = vst [vmem:[#allocation2 + $0x88] sm:$0xff] %v246
      %311 = vst [vmem:[#allocation2 + $0x90] sm:$0xff] %v247
      %312 = vst [vmem:[#allocation2 + $0x98] sm:$0xff] %v248
      %313 = vst [vmem:[#allocation2 + $0xa0] sm:$0xff] %v249
      %314 = vst [vmem:[#allocation2 + $0xa8] sm:$0xff] %v250
      %315 = vst [vmem:[#allocation2 + $0xb0] sm:$0xff] %v251
      %316 = vst [vmem:[#allocation2 + $0xb8] sm:$0xff] %v252
      %317 = vst [vmem:[#allocation2 + $0xc0] sm:$0xff] %v253
      %318 = vst [vmem:[#allocation2 + $0xc8] sm:$0xff] %v254
      %319 = vst [vmem:[#allocation2 + $0xd0] sm:$0xff] %v255
      %320 = vst [vmem:[#allocation2 + $0xd8] sm:$0xff] %v256
      %321 = vst [vmem:[#allocation2 + $0xe0] sm:$0xff] %v257
      %322 = vst [vmem:[#allocation2 + $0xe8] sm:$0xff] %v258
      %323 = vst [vmem:[#allocation2 + $0xf0] sm:$0xff] %v259
      %324 = vst [vmem:[#allocation2 + $0xf8] sm:$0xff] %v260
      %325 = vst [vmem:[#allocation2 + $0x100] sm:$0xff] %v261
      %326 = vst [vmem:[#allocation2 + $0x108] sm:$0xff] %v262
      %327 = vst [vmem:[#allocation2 + $0x110] sm:$0xff] %v263
      %328 = vst [vmem:[#allocation2 + $0x118] sm:$0xff] %v264
      %329 = vst [vmem:[#allocation2 + $0x120] sm:$0xff] %v265
      %330 = vst [vmem:[#allocation2 + $0x128] sm:$0xff] %v266
      %331 = vst [vmem:[#allocation2 + $0x130] sm:$0xff] %v267
      %332 = vst [vmem:[#allocation2 + $0x138] sm:$0xff] %v268
      %333 = vst [vmem:[#allocation2 + $0x140] sm:$0xff] %v269
      %334 = vst [vmem:[#allocation2 + $0x148] sm:$0xff] %v270
      %335 = vst [vmem:[#allocation2 + $0x150] sm:$0xff] %v271
      %336 = vst [vmem:[#allocation2 + $0x158] sm:$0xff] %v272
      %337 = vst [vmem:[#allocation2 + $0x160] sm:$0xff] %v273
      %338 = vst [vmem:[#allocation2 + $0x168] sm:$0xff] %v274
      %339 = vst [vmem:[#allocation2 + $0x170] sm:$0xff] %v275
      %340 = vst [vmem:[#allocation2 + $0x178] sm:$0xff] %v276
      %341 = vst [vmem:[#allocation2 + $0x180] sm:$0xff] %v277
      %342 = vst [vmem:[#allocation2 + $0x188] sm:$0xff] %v278
      %343 = vst [vmem:[#allocation2 + $0x190] sm:$0xff] %v279
      %344 = vst [vmem:[#allocation2 + $0x198] sm:$0xff] %v280
      %345 = vst [vmem:[#allocation2 + $0x1a0] sm:$0xff] %v281
      %346 = vst [vmem:[#allocation2 + $0x1a8] sm:$0xff] %v282
      %347 = vst [vmem:[#allocation2 + $0x1b0] sm:$0xff] %v283
      %348 = vst [vmem:[#allocation2 + $0x1b8] sm:$0xff] %v284
      %349 = vst [vmem:[#allocation2 + $0x1c0] sm:$0xff] %v285
      %350 = vst [vmem:[#allocation2 + $0x1c8] sm:$0xff] %v286
      %351 = vst [vmem:[#allocation2 + $0x1d0] sm:$0xff] %v287
      %352 = vst [vmem:[#allocation2 + $0x1d8] sm:$0xff] %v288
      %353 = vst [vmem:[#allocation2 + $0x1e0] sm:$0xff] %v289
      %354 = vst [vmem:[#allocation2 + $0x1e8] sm:$0xff] %v290
      %355 = vst [vmem:[#allocation2 + $0x1f0] sm:$0xff] %v291
      %356 = vst [vmem:[#allocation2 + $0x1f8] sm:$0xff] %v292
    $region18: #{tpu_custom_call.1} parent=1 // loop_footer
      %s95 = sadd.s32 1, %s91
    $region19: #{tpu_custom_call.1} parent=1 // loop_footer_branch
      %90 = sbr.rel target = $region15
    $region20: #{tpu_custom_call.1} parent=1 // loop_exit
      _
    // Predicated region
    $region21: #{tpu_custom_call.1} parent=1 // pred_check
      %p357 = pneg %p22
    $region22: #{tpu_custom_call.1} parent=1 // pred_check_branch
      %359 = sbr.rel (%p357) target = $region24
    $region23: #{tpu_custom_call.1} parent=1 // pred_region
      %v360 = vld [vmem:[#allocation2] sm:$0xff]
      %v361 = vld [vmem:[#allocation2 + $0x8] sm:$0xff]
      %v362 = vld [vmem:[#allocation2 + $0x10] sm:$0xff]
      %v363 = vld [vmem:[#allocation2 + $0x18] sm:$0xff]
      %v364 = vld [vmem:[#allocation2 + $0x20] sm:$0xff]
      %v365 = vld [vmem:[#allocation2 + $0x28] sm:$0xff]
      %v366 = vld [vmem:[#allocation2 + $0x30] sm:$0xff]
      %v367 = vld [vmem:[#allocation2 + $0x38] sm:$0xff]
      %v368 = vld [vmem:[#allocation2 + $0x40] sm:$0xff]
      %v369 = vld [vmem:[#allocation2 + $0x48] sm:$0xff]
      %v370 = vld [vmem:[#allocation2 + $0x50] sm:$0xff]
      %v371 = vld [vmem:[#allocation2 + $0x58] sm:$0xff]
      %v372 = vld [vmem:[#allocation2 + $0x60] sm:$0xff]
      %v373 = vld [vmem:[#allocation2 + $0x68] sm:$0xff]
      %v374 = vld [vmem:[#allocation2 + $0x70] sm:$0xff]
      %v375 = vld [vmem:[#allocation2 + $0x78] sm:$0xff]
      %v376 = vld [vmem:[#allocation2 + $0x80] sm:$0xff]
      %v377 = vld [vmem:[#allocation2 + $0x88] sm:$0xff]
      %v378 = vld [vmem:[#allocation2 + $0x90] sm:$0xff]
      %v379 = vld [vmem:[#allocation2 + $0x98] sm:$0xff]
      %v380 = vld [vmem:[#allocation2 + $0xa0] sm:$0xff]
      %v381 = vld [vmem:[#allocation2 + $0xa8] sm:$0xff]
      %v382 = vld [vmem:[#allocation2 + $0xb0] sm:$0xff]
      %v383 = vld [vmem:[#allocation2 + $0xb8] sm:$0xff]
      %v384 = vld [vmem:[#allocation2 + $0xc0] sm:$0xff]
      %v385 = vld [vmem:[#allocation2 + $0xc8] sm:$0xff]
      %v386 = vld [vmem:[#allocation2 + $0xd0] sm:$0xff]
      %v387 = vld [vmem:[#allocation2 + $0xd8] sm:$0xff]
      %v388 = vld [vmem:[#allocation2 + $0xe0] sm:$0xff]
      %v389 = vld [vmem:[#allocation2 + $0xe8] sm:$0xff]
      %v390 = vld [vmem:[#allocation2 + $0xf0] sm:$0xff]
      %v391 = vld [vmem:[#allocation2 + $0xf8] sm:$0xff]
      %v392 = vld [vmem:[#allocation2 + $0x100] sm:$0xff]
      %v393 = vld [vmem:[#allocation2 + $0x108] sm:$0xff]
      %v394 = vld [vmem:[#allocation2 + $0x110] sm:$0xff]
      %v395 = vld [vmem:[#allocation2 + $0x118] sm:$0xff]
      %v396 = vld [vmem:[#allocation2 + $0x120] sm:$0xff]
      %v397 = vld [vmem:[#allocation2 + $0x128] sm:$0xff]
      %v398 = vld [vmem:[#allocation2 + $0x130] sm:$0xff]
      %v399 = vld [vmem:[#allocation2 + $0x138] sm:$0xff]
      %v400 = vld [vmem:[#allocation2 + $0x140] sm:$0xff]
      %v401 = vld [vmem:[#allocation2 + $0x148] sm:$0xff]
      %v402 = vld [vmem:[#allocation2 + $0x150] sm:$0xff]
      %v403 = vld [vmem:[#allocation2 + $0x158] sm:$0xff]
      %v404 = vld [vmem:[#allocation2 + $0x160] sm:$0xff]
      %v405 = vld [vmem:[#allocation2 + $0x168] sm:$0xff]
      %v406 = vld [vmem:[#allocation2 + $0x170] sm:$0xff]
      %v407 = vld [vmem:[#allocation2 + $0x178] sm:$0xff]
      %v408 = vld [vmem:[#allocation2 + $0x180] sm:$0xff]
      %v409 = vld [vmem:[#allocation2 + $0x188] sm:$0xff]
      %v410 = vld [vmem:[#allocation2 + $0x190] sm:$0xff]
      %v411 = vld [vmem:[#allocation2 + $0x198] sm:$0xff]
      %v412 = vld [vmem:[#allocation2 + $0x1a0] sm:$0xff]
      %v413 = vld [vmem:[#allocation2 + $0x1a8] sm:$0xff]
      %v414 = vld [vmem:[#allocation2 + $0x1b0] sm:$0xff]
      %v415 = vld [vmem:[#allocation2 + $0x1b8] sm:$0xff]
      %v416 = vld [vmem:[#allocation2 + $0x1c0] sm:$0xff]
      %v417 = vld [vmem:[#allocation2 + $0x1c8] sm:$0xff]
      %v418 = vld [vmem:[#allocation2 + $0x1d0] sm:$0xff]
      %v419 = vld [vmem:[#allocation2 + $0x1d8] sm:$0xff]
      %v420 = vld [vmem:[#allocation2 + $0x1e0] sm:$0xff]
      %v421 = vld [vmem:[#allocation2 + $0x1e8] sm:$0xff]
      %v422 = vld [vmem:[#allocation2 + $0x1f0] sm:$0xff]
      %v423 = vld [vmem:[#allocation2 + $0x1f8] sm:$0xff]
      %424 = vmax.xlane.f32.xlu0 %v360
      %v425 = vpop.xlane.xlu0 %424
      %426 = vmax.xlane.f32.xlu0 %v361
      %v427 = vpop.xlane.xlu0 %426
      %428 = vmax.xlane.f32.xlu0 %v362
      %v429 = vpop.xlane.xlu0 %428
      %430 = vmax.xlane.f32.xlu0 %v363
      %v431 = vpop.xlane.xlu0 %430
      %432 = vmax.xlane.f32.xlu0 %v364
      %v433 = vpop.xlane.xlu0 %432
      %434 = vmax.xlane.f32.xlu0 %v365
      %v435 = vpop.xlane.xlu0 %434
      %436 = vmax.xlane.f32.xlu0 %v366
      %v437 = vpop.xlane.xlu0 %436
      %438 = vmax.xlane.f32.xlu0 %v367
      %v439 = vpop.xlane.xlu0 %438
      %440 = vmax.xlane.f32.xlu0 %v368
      %v441 = vpop.xlane.xlu0 %440
      %442 = vmax.xlane.f32.xlu0 %v369
      %v443 = vpop.xlane.xlu0 %442
      %444 = vmax.xlane.f32.xlu0 %v370
      %v445 = vpop.xlane.xlu0 %444
      %446 = vmax.xlane.f32.xlu0 %v371
      %v447 = vpop.xlane.xlu0 %446
      %448 = vmax.xlane.f32.xlu0 %v372
      %v449 = vpop.xlane.xlu0 %448
      %450 = vmax.xlane.f32.xlu0 %v373
      %v451 = vpop.xlane.xlu0 %450
      %452 = vmax.xlane.f32.xlu0 %v374
      %v453 = vpop.xlane.xlu0 %452
      %454 = vmax.xlane.f32.xlu0 %v375
      %v455 = vpop.xlane.xlu0 %454
      %456 = vmax.xlane.f32.xlu0 %v376
      %v457 = vpop.xlane.xlu0 %456
      %458 = vmax.xlane.f32.xlu0 %v377
      %v459 = vpop.xlane.xlu0 %458
      %460 = vmax.xlane.f32.xlu0 %v378
      %v461 = vpop.xlane.xlu0 %460
      %462 = vmax.xlane.f32.xlu0 %v379
      %v463 = vpop.xlane.xlu0 %462
      %464 = vmax.xlane.f32.xlu0 %v380
      %v465 = vpop.xlane.xlu0 %464
      %466 = vmax.xlane.f32.xlu0 %v381
      %v467 = vpop.xlane.xlu0 %466
      %468 = vmax.xlane.f32.xlu0 %v382
      %v469 = vpop.xlane.xlu0 %468
      %470 = vmax.xlane.f32.xlu0 %v383
      %v471 = vpop.xlane.xlu0 %470
      %472 = vmax.xlane.f32.xlu0 %v384
      %v473 = vpop.xlane.xlu0 %472
      %474 = vmax.xlane.f32.xlu0 %v385
      %v475 = vpop.xlane.xlu0 %474
      %476 = vmax.xlane.f32.xlu0 %v386
      %v477 = vpop.xlane.xlu0 %476
      %478 = vmax.xlane.f32.xlu0 %v387
      %v479 = vpop.xlane.xlu0 %478
      %480 = vmax.xlane.f32.xlu0 %v388
      %v481 = vpop.xlane.xlu0 %480
      %482 = vmax.xlane.f32.xlu0 %v389
      %v483 = vpop.xlane.xlu0 %482
      %484 = vmax.xlane.f32.xlu0 %v390
      %v485 = vpop.xlane.xlu0 %484
      %486 = vmax.xlane.f32.xlu0 %v391
      %v487 = vpop.xlane.xlu0 %486
      %488 = vmax.xlane.f32.xlu0 %v392
      %v489 = vpop.xlane.xlu0 %488
      %490 = vmax.xlane.f32.xlu0 %v393
      %v491 = vpop.xlane.xlu0 %490
      %492 = vmax.xlane.f32.xlu0 %v394
      %v493 = vpop.xlane.xlu0 %492
      %494 = vmax.xlane.f32.xlu0 %v395
      %v495 = vpop.xlane.xlu0 %494
      %496 = vmax.xlane.f32.xlu0 %v396
      %v497 = vpop.xlane.xlu0 %496
      %498 = vmax.xlane.f32.xlu0 %v397
      %v499 = vpop.xlane.xlu0 %498
      %500 = vmax.xlane.f32.xlu0 %v398
      %v501 = vpop.xlane.xlu0 %500
      %502 = vmax.xlane.f32.xlu0 %v399
      %v503 = vpop.xlane.xlu0 %502
      %504 = vmax.xlane.f32.xlu0 %v400
      %v505 = vpop.xlane.xlu0 %504
      %506 = vmax.xlane.f32.xlu0 %v401
      %v507 = vpop.xlane.xlu0 %506
      %508 = vmax.xlane.f32.xlu0 %v402
      %v509 = vpop.xlane.xlu0 %508
      %510 = vmax.xlane.f32.xlu0 %v403
      %v511 = vpop.xlane.xlu0 %510
      %512 = vmax.xlane.f32.xlu0 %v404
      %v513 = vpop.xlane.xlu0 %512
      %514 = vmax.xlane.f32.xlu0 %v405
      %v515 = vpop.xlane.xlu0 %514
      %516 = vmax.xlane.f32.xlu0 %v406
      %v517 = vpop.xlane.xlu0 %516
      %518 = vmax.xlane.f32.xlu0 %v407
      %v519 = vpop.xlane.xlu0 %518
      %520 = vmax.xlane.f32.xlu0 %v408
      %v521 = vpop.xlane.xlu0 %520
      %522 = vmax.xlane.f32.xlu0 %v409
      %v523 = vpop.xlane.xlu0 %522
      %524 = vmax.xlane.f32.xlu0 %v410
      %v525 = vpop.xlane.xlu0 %524
      %526 = vmax.xlane.f32.xlu0 %v411
      %v527 = vpop.xlane.xlu0 %526
      %528 = vmax.xlane.f32.xlu0 %v412
      %v529 = vpop.xlane.xlu0 %528
      %530 = vmax.xlane.f32.xlu0 %v413
      %v531 = vpop.xlane.xlu0 %530
      %532 = vmax.xlane.f32.xlu0 %v414
      %v533 = vpop.xlane.xlu0 %532
      %534 = vmax.xlane.f32.xlu0 %v415
      %v535 = vpop.xlane.xlu0 %534
      %536 = vmax.xlane.f32.xlu0 %v416
      %v537 = vpop.xlane.xlu0 %536
      %538 = vmax.xlane.f32.xlu0 %v417
      %v539 = vpop.xlane.xlu0 %538
      %540 = vmax.xlane.f32.xlu0 %v418
      %v541 = vpop.xlane.xlu0 %540
      %542 = vmax.xlane.f32.xlu0 %v419
      %v543 = vpop.xlane.xlu0 %542
      %544 = vmax.xlane.f32.xlu0 %v420
      %v545 = vpop.xlane.xlu0 %544
      %546 = vmax.xlane.f32.xlu0 %v421
      %v547 = vpop.xlane.xlu0 %546
      %548 = vmax.xlane.f32.xlu0 %v422
      %v549 = vpop.xlane.xlu0 %548
      %550 = vmax.xlane.f32.xlu0 %v423
      %v551 = vpop.xlane.xlu0 %550
      %vm552 = vcmask 7168
      %553 = vst.msk [vmem:[%s1] sm:$0xff] %vm552, %v425
      %554 = vst.msk [vmem:[%s1 + $0x8] sm:$0xff] %vm552, %v427
      %555 = vst.msk [vmem:[%s1 + $0x10] sm:$0xff] %vm552, %v429
      %556 = vst.msk [vmem:[%s1 + $0x18] sm:$0xff] %vm552, %v431
      %557 = vst.msk [vmem:[%s1 + $0x20] sm:$0xff] %vm552, %v433
      %558 = vst.msk [vmem:[%s1 + $0x28] sm:$0xff] %vm552, %v435
      %559 = vst.msk [vmem:[%s1 + $0x30] sm:$0xff] %vm552, %v437
      %560 = vst.msk [vmem:[%s1 + $0x38] sm:$0xff] %vm552, %v439
      %561 = vst.msk [vmem:[%s1 + $0x40] sm:$0xff] %vm552, %v441
      %562 = vst.msk [vmem:[%s1 + $0x48] sm:$0xff] %vm552, %v443
      %563 = vst.msk [vmem:[%s1 + $0x50] sm:$0xff] %vm552, %v445
      %564 = vst.msk [vmem:[%s1 + $0x58] sm:$0xff] %vm552, %v447
      %565 = vst.msk [vmem:[%s1 + $0x60] sm:$0xff] %vm552, %v449
      %566 = vst.msk [vmem:[%s1 + $0x68] sm:$0xff] %vm552, %v451
      %567 = vst.msk [vmem:[%s1 + $0x70] sm:$0xff] %vm552, %v453
      %568 = vst.msk [vmem:[%s1 + $0x78] sm:$0xff] %vm552, %v455
      %569 = vst.msk [vmem:[%s1 + $0x80] sm:$0xff] %vm552, %v457
      %570 = vst.msk [vmem:[%s1 + $0x88] sm:$0xff] %vm552, %v459
      %571 = vst.msk [vmem:[%s1 + $0x90] sm:$0xff] %vm552, %v461
      %572 = vst.msk [vmem:[%s1 + $0x98] sm:$0xff] %vm552, %v463
      %573 = vst.msk [vmem:[%s1 + $0xa0] sm:$0xff] %vm552, %v465
      %574 = vst.msk [vmem:[%s1 + $0xa8] sm:$0xff] %vm552, %v467
      %575 = vst.msk [vmem:[%s1 + $0xb0] sm:$0xff] %vm552, %v469
      %576 = vst.msk [vmem:[%s1 + $0xb8] sm:$0xff] %vm552, %v471
      %577 = vst.msk [vmem:[%s1 + $0xc0] sm:$0xff] %vm552, %v473
      %578 = vst.msk [vmem:[%s1 + $0xc8] sm:$0xff] %vm552, %v475
      %579 = vst.msk [vmem:[%s1 + $0xd0] sm:$0xff] %vm552, %v477
      %580 = vst.msk [vmem:[%s1 + $0xd8] sm:$0xff] %vm552, %v479
      %581 = vst.msk [vmem:[%s1 + $0xe0] sm:$0xff] %vm552, %v481
      %582 = vst.msk [vmem:[%s1 + $0xe8] sm:$0xff] %vm552, %v483
      %583 = vst.msk [vmem:[%s1 + $0xf0] sm:$0xff] %vm552, %v485
      %584 = vst.msk [vmem:[%s1 + $0xf8] sm:$0xff] %vm552, %v487
      %585 = vst.msk [vmem:[%s1 + $0x100] sm:$0xff] %vm552, %v489
      %586 = vst.msk [vmem:[%s1 + $0x108] sm:$0xff] %vm552, %v491
      %587 = vst.msk [vmem:[%s1 + $0x110] sm:$0xff] %vm552, %v493
      %588 = vst.msk [vmem:[%s1 + $0x118] sm:$0xff] %vm552, %v495
      %589 = vst.msk [vmem:[%s1 + $0x120] sm:$0xff] %vm552, %v497
      %590 = vst.msk [vmem:[%s1 + $0x128] sm:$0xff] %vm552, %v499
      %591 = vst.msk [vmem:[%s1 + $0x130] sm:$0xff] %vm552, %v501
      %592 = vst.msk [vmem:[%s1 + $0x138] sm:$0xff] %vm552, %v503
      %593 = vst.msk [vmem:[%s1 + $0x140] sm:$0xff] %vm552, %v505
      %594 = vst.msk [vmem:[%s1 + $0x148] sm:$0xff] %vm552, %v507
      %595 = vst.msk [vmem:[%s1 + $0x150] sm:$0xff] %vm552, %v509
      %596 = vst.msk [vmem:[%s1 + $0x158] sm:$0xff] %vm552, %v511
      %597 = vst.msk [vmem:[%s1 + $0x160] sm:$0xff] %vm552, %v513
      %598 = vst.msk [vmem:[%s1 + $0x168] sm:$0xff] %vm552, %v515
      %599 = vst.msk [vmem:[%s1 + $0x170] sm:$0xff] %vm552, %v517
      %600 = vst.msk [vmem:[%s1 + $0x178] sm:$0xff] %vm552, %v519
      %601 = vst.msk [vmem:[%s1 + $0x180] sm:$0xff] %vm552, %v521
      %602 = vst.msk [vmem:[%s1 + $0x188] sm:$0xff] %vm552, %v523
      %603 = vst.msk [vmem:[%s1 + $0x190] sm:$0xff] %vm552, %v525
      %604 = vst.msk [vmem:[%s1 + $0x198] sm:$0xff] %vm552, %v527
      %605 = vst.msk [vmem:[%s1 + $0x1a0] sm:$0xff] %vm552, %v529
      %606 = vst.msk [vmem:[%s1 + $0x1a8] sm:$0xff] %vm552, %v531
      %607 = vst.msk [vmem:[%s1 + $0x1b0] sm:$0xff] %vm552, %v533
      %608 = vst.msk [vmem:[%s1 + $0x1b8] sm:$0xff] %vm552, %v535
      %609 = vst.msk [vmem:[%s1 + $0x1c0] sm:$0xff] %vm552, %v537
      %610 = vst.msk [vmem:[%s1 + $0x1c8] sm:$0xff] %vm552, %v539
      %611 = vst.msk [vmem:[%s1 + $0x1d0] sm:$0xff] %vm552, %v541
      %612 = vst.msk [vmem:[%s1 + $0x1d8] sm:$0xff] %vm552, %v543
      %613 = vst.msk [vmem:[%s1 + $0x1e0] sm:$0xff] %vm552, %v545
      %614 = vst.msk [vmem:[%s1 + $0x1e8] sm:$0xff] %vm552, %v547
      %615 = vst.msk [vmem:[%s1 + $0x1f0] sm:$0xff] %vm552, %v549
      %616 = vst.msk [vmem:[%s1 + $0x1f8] sm:$0xff] %vm552, %v551
    $region24: #{tpu_custom_call.1} parent=1 // pred_fallthru
      _
    // Predicated region
    $region25: #{tpu_custom_call.1} parent=1 // pred_check
      _
    $region26: #{tpu_custom_call.1} parent=1 // pred_check_branch
      %618 = sbr.rel (0) target = $region28
    $region27: #{tpu_custom_call.1} parent=1 // pred_region
      _
    $region28: #{tpu_custom_call.1} parent=1 // pred_fallthru
      _
    // Predicated region
    $region29: #{tpu_custom_call.1} parent=1 // pred_check
      _
    $region30: #{tpu_custom_call.1} parent=1 // pred_check_branch
      %620 = sbr.rel (0) target = $region32
    $region31: #{tpu_custom_call.1} parent=1 // pred_region
      _
    $region32: #{tpu_custom_call.1} parent=1 // pred_fallthru
      _
    %621 = vsyncpa [#allocation4], 1

</llo_original>
